<compile_context>
chip_gen: v7x
topology: tpu7x:2x2x1
jax: 0.10.0
libtpu: 0.0.40
codegen_flags: <defaults>
</compile_context>

<pallas_src>
import jax
import jax.numpy as jnp
from jax.experimental import pallas as pl
from jax.experimental.pallas import tpu as pltpu


AGENT_RANGE = 5
WIDTH = 2 * AGENT_RANGE + 1                     # 11
LAST_FRAME_FT = 2 * WIDTH ** 2                  # 242
FIELD_FT = 40
LINEAR_INPUTS = LAST_FRAME_FT + FIELD_FT        # 282
NUM_HIDDEN = 300
HIDDEN2 = 50
NUM_ACTIONS = 4


def _value_net_kernel(x_ref, w1_ref, b1_ref, w2_ref, b2_ref, w3_ref, b3_ref,
                      out_ref):
    """One batch tile of the MLP.  x is bf16, weights bf16, biases f32."""
    # Linear(282 -> 300) + bias + ReLU  (matmul bf16xbf16 -> f32 accumulate)
    h1 = jnp.dot(x_ref[...], w1_ref[...], preferred_element_type=jnp.float32)
    h1 = jnp.maximum(h1 + b1_ref[...], 0.0)                     # f32 elementwise

    # Dropout(p=0.3): identity at inference time.

    # Linear(300 -> 50) + bias + ReLU
    h2 = jnp.dot(h1.astype(jnp.bfloat16), w2_ref[...],
                 preferred_element_type=jnp.float32)
    h2 = jnp.maximum(h2 + b2_ref[...], 0.0)

    # Linear(50 -> 4) + bias
    out = jnp.dot(h2.astype(jnp.bfloat16), w3_ref[...],
                  preferred_element_type=jnp.float32)
    out = out + b3_ref[...]

    out_ref[...] = out.astype(out_ref.dtype)


def value_net_forward(state, params, *, tile_batch=256):
    """state: (batch, 282) float -> (batch, 4) float32.

    params: (w1, b1, w2, b2, w3, b3) with weights bf16 (in, out) and biases
    f32 (1, out) — see pack_params_for_kernel.
    """
    w1, b1, w2, b2, w3, b3 = params
    batch = state.shape[0]

    # Tile size: multiple of 8 (f32/bf16 sublane rule), capped at tile_batch.
    tb = min(tile_batch, pl.cdiv(batch, 8) * 8)
    padded_batch = pl.cdiv(batch, tb) * tb

    x = state.astype(jnp.bfloat16)
    if padded_batch != batch:
        x = jnp.pad(x, ((0, padded_batch - batch), (0, 0)))

    grid = (padded_batch // tb,)

    # State / output tiled over batch; weights & biases resident in VMEM
    # (constant index maps -> no re-DMA across grid steps).
    in_specs = [
        pl.BlockSpec((tb, LINEAR_INPUTS), lambda i: (i, 0)),          # x tile
        pl.BlockSpec((LINEAR_INPUTS, NUM_HIDDEN), lambda i: (0, 0)),  # w1
        pl.BlockSpec((1, NUM_HIDDEN), lambda i: (0, 0)),              # b1
        pl.BlockSpec((NUM_HIDDEN, HIDDEN2), lambda i: (0, 0)),        # w2
        pl.BlockSpec((1, HIDDEN2), lambda i: (0, 0)),                 # b2
        pl.BlockSpec((HIDDEN2, NUM_ACTIONS), lambda i: (0, 0)),       # w3
        pl.BlockSpec((1, NUM_ACTIONS), lambda i: (0, 0)),             # b3
    ]
    out_specs = pl.BlockSpec((tb, NUM_ACTIONS), lambda i: (i, 0))

    flops = 2 * padded_batch * (LINEAR_INPUTS * NUM_HIDDEN
                                + NUM_HIDDEN * HIDDEN2
                                + HIDDEN2 * NUM_ACTIONS)
    bytes_accessed = (
        x.size * x.dtype.itemsize
        + sum(p.size * p.dtype.itemsize for p in (w1, b1, w2, b2, w3, b3))
        + padded_batch * NUM_ACTIONS * 4
    )

    out = pl.pallas_call(
        _value_net_kernel,
        out_shape=jax.ShapeDtypeStruct((padded_batch, NUM_ACTIONS),
                                       jnp.float32),
        grid=grid,
        in_specs=in_specs,
        out_specs=out_specs,
        compiler_params=pltpu.CompilerParams(
            dimension_semantics=("parallel",)),
        cost_estimate=pl.CostEstimate(flops=flops,
                                      transcendentals=0,
                                      bytes_accessed=bytes_accessed),
    )(x, w1, b1, w2, b2, w3, b3)

    return out[:batch]


def init_params(key):
    """PyTorch nn.Linear default init: U(-1/sqrt(fan_in), 1/sqrt(fan_in)).
    Weights stored (in_features, out_features), biases (1, out).  f32."""
    def linear(key, fan_in, fan_out):
        kw, kb = jax.random.split(key)
        bound = 1.0 / jnp.sqrt(fan_in)
        w = jax.random.uniform(kw, (fan_in, fan_out), jnp.float32,
                               minval=-bound, maxval=bound)
        b = jax.random.uniform(kb, (1, fan_out), jnp.float32,
                               minval=-bound, maxval=bound)
        return w, b

    k1, k2, k3 = jax.random.split(key, 3)
    w1, b1 = linear(k1, LINEAR_INPUTS, NUM_HIDDEN)
    w2, b2 = linear(k2, NUM_HIDDEN, HIDDEN2)
    w3, b3 = linear(k3, HIDDEN2, NUM_ACTIONS)
    return (w1, b1, w2, b2, w3, b3)


def pack_params_for_kernel(params):
    """Cast matmul weights to bf16 (MXU-native, halves HBM traffic);
    biases stay f32 (v5e VPU has no bf16 elementwise)."""
    w1, b1, w2, b2, w3, b3 = params
    return (w1.astype(jnp.bfloat16), b1,
            w2.astype(jnp.bfloat16), b2,
            w3.astype(jnp.bfloat16), b3)


def reference_forward(state, kernel_params):
    """Pure-JAX reference using the SAME bf16-rounded operands the kernel
    sees (upcast to f32 for the math), so comparison tolerances stay tight."""
    w1, b1, w2, b2, w3, b3 = kernel_params
    x = state.astype(jnp.bfloat16).astype(jnp.float32)
    h1 = jnp.maximum(x @ w1.astype(jnp.float32) + b1, 0.0)
    h1 = h1.astype(jnp.bfloat16).astype(jnp.float32)
    h2 = jnp.maximum(h1 @ w2.astype(jnp.float32) + b2, 0.0)
    h2 = h2.astype(jnp.bfloat16).astype(jnp.float32)
    return h2 @ w3.astype(jnp.float32) + b3


if __name__ == "__main__":
    key = jax.random.PRNGKey(0)
    k_params, k_state = jax.random.split(key)

    params_f32 = init_params(k_params)
    params = pack_params_for_kernel(params_f32)

    batch = 2
    # state = concat(last-frame features (242), field features (40)) -> (2, 282)
    state = jax.random.normal(k_state, (batch, LINEAR_INPUTS), jnp.float32)

    out = value_net_forward(state, params)
    out = jax.block_until_ready(out)

    ref = reference_forward(state, params)
    assert out.shape == (batch, NUM_ACTIONS)
    assert jnp.allclose(out, ref, atol=2e-2, rtol=2e-2), "mismatch vs reference"

    print("KERNEL_OK")
</pallas_src>

<mosaic_0001>
module attributes {stable_mosaic.version = 11 : i64} {
  func.func @_value_net_kernel(%arg0: i32, %arg1: memref<8x282xbf16, #tpu.memory_space<vmem>>, %arg2: memref<282x300xbf16, #tpu.memory_space<vmem>>, %arg3: memref<1x300xf32, #tpu.memory_space<vmem>>, %arg4: memref<300x50xbf16, #tpu.memory_space<vmem>>, %arg5: memref<1x50xf32, #tpu.memory_space<vmem>>, %arg6: memref<50x4xbf16, #tpu.memory_space<vmem>>, %arg7: memref<1x4xf32, #tpu.memory_space<vmem>>, %arg8: memref<8x4xf32, #tpu.memory_space<vmem>>) attributes {dimension_semantics = [#tpu.dimension_semantics<parallel>], iteration_bounds = array<i64: 1>, scalar_prefetch = 0 : i64, scratch_operands = 0 : i64, tpu.core_type = #tpu.core_type<tc>, window_params = [{transform_indices = @transform_0, window_bounds = array<i64: 8, 282>}, {pipeline_mode = #tpu.pipeline_mode<synchronous>, transform_indices = @transform_1, window_bounds = array<i64: 282, 300>}, {pipeline_mode = #tpu.pipeline_mode<synchronous>, transform_indices = @transform_2, window_bounds = array<i64: 1, 300>}, {pipeline_mode = #tpu.pipeline_mode<synchronous>, transform_indices = @transform_3, window_bounds = array<i64: 300, 50>}, {pipeline_mode = #tpu.pipeline_mode<synchronous>, transform_indices = @transform_4, window_bounds = array<i64: 1, 50>}, {pipeline_mode = #tpu.pipeline_mode<synchronous>, transform_indices = @transform_5, window_bounds = array<i64: 50, 4>}, {pipeline_mode = #tpu.pipeline_mode<synchronous>, transform_indices = @transform_6, window_bounds = array<i64: 1, 4>}, {transform_indices = @transform_7, window_bounds = array<i64: 8, 4>}]} {
    %c0 = arith.constant 0 : index
    %c0_0 = arith.constant 0 : index
    %0 = vector.load %arg1[%c0, %c0_0] : memref<8x282xbf16, #tpu.memory_space<vmem>>, vector<8x282xbf16>
    %c0_1 = arith.constant 0 : index
    %c0_2 = arith.constant 0 : index
    %1 = vector.load %arg2[%c0_1, %c0_2] : memref<282x300xbf16, #tpu.memory_space<vmem>>, vector<282x300xbf16>
    %cst = arith.constant dense<0.000000e+00> : vector<8x300xf32>
    %2 = tpu.matmul %0, %1, %cst {dimension_numbers = #tpu.dot_dimension_numbers<[1], [0], [0], [1], [0, 0, 1, 1], [], []>} : vector<8x282xbf16>, vector<282x300xbf16>, vector<8x300xf32> -> vector<8x300xf32>
    %c0_3 = arith.constant 0 : index
    %c0_4 = arith.constant 0 : index
    %3 = vector.load %arg3[%c0_3, %c0_4] : memref<1x300xf32, #tpu.memory_space<vmem>>, vector<1x300xf32>
    %4 = vector.broadcast %3 : vector<1x300xf32> to vector<8x300xf32>
    %5 = arith.addf %2, %4 : vector<8x300xf32>
    %cst_5 = arith.constant 0.000000e+00 : f32
    %6 = vector.broadcast %cst_5 : f32 to vector<8x300xf32>
    %7 = arith.maximumf %5, %6 : vector<8x300xf32>
    %8 = arith.truncf %7 : vector<8x300xf32> to vector<8x300xbf16>
    %c0_6 = arith.constant 0 : index
    %c0_7 = arith.constant 0 : index
    %9 = vector.load %arg4[%c0_6, %c0_7] : memref<300x50xbf16, #tpu.memory_space<vmem>>, vector<300x50xbf16>
    %cst_8 = arith.constant dense<0.000000e+00> : vector<8x50xf32>
    %10 = tpu.matmul %8, %9, %cst_8 {dimension_numbers = #tpu.dot_dimension_numbers<[1], [0], [0], [1], [0, 0, 1, 1], [], []>} : vector<8x300xbf16>, vector<300x50xbf16>, vector<8x50xf32> -> vector<8x50xf32>
    %c0_9 = arith.constant 0 : index
    %c0_10 = arith.constant 0 : index
    %11 = vector.load %arg5[%c0_9, %c0_10] : memref<1x50xf32, #tpu.memory_space<vmem>>, vector<1x50xf32>
    %12 = vector.broadcast %11 : vector<1x50xf32> to vector<8x50xf32>
    %13 = arith.addf %10, %12 : vector<8x50xf32>
    %cst_11 = arith.constant 0.000000e+00 : f32
    %14 = vector.broadcast %cst_11 : f32 to vector<8x50xf32>
    %15 = arith.maximumf %13, %14 : vector<8x50xf32>
    %16 = arith.truncf %15 : vector<8x50xf32> to vector<8x50xbf16>
    %c0_12 = arith.constant 0 : index
    %c0_13 = arith.constant 0 : index
    %17 = vector.load %arg6[%c0_12, %c0_13] : memref<50x4xbf16, #tpu.memory_space<vmem>>, vector<50x4xbf16>
    %cst_14 = arith.constant dense<0.000000e+00> : vector<8x4xf32>
    %18 = tpu.matmul %16, %17, %cst_14 {dimension_numbers = #tpu.dot_dimension_numbers<[1], [0], [0], [1], [0, 0, 1, 1], [], []>} : vector<8x50xbf16>, vector<50x4xbf16>, vector<8x4xf32> -> vector<8x4xf32>
    %c0_15 = arith.constant 0 : index
    %c0_16 = arith.constant 0 : index
    %19 = vector.load %arg7[%c0_15, %c0_16] : memref<1x4xf32, #tpu.memory_space<vmem>>, vector<1x4xf32>
    %20 = vector.broadcast %19 : vector<1x4xf32> to vector<8x4xf32>
    %21 = arith.addf %18, %20 : vector<8x4xf32>
    %c0_17 = arith.constant 0 : index
    %c0_18 = arith.constant 0 : index
    %22 = vector.load %arg8[%c0_17, %c0_18] : memref<8x4xf32, #tpu.memory_space<vmem>>, vector<8x4xf32>
    tpu.vector_store %arg8[%c0_17, %c0_18], %21 {strides = array<i32>} : memref<8x4xf32, #tpu.memory_space<vmem>>, vector<8x4xf32>,
    return
  }
  func.func @transform_0(%arg0: i32) -> (i32, i32) {
    %c0_i32 = arith.constant 0 : i32
    %c0_i32_0 = arith.constant 0 : i32
    return %arg0, %c0_i32 : i32, i32
  }
  func.func @transform_1(%arg0: i32) -> (i32, i32) {
    %c0_i32 = arith.constant 0 : i32
    %c0_i32_0 = arith.constant 0 : i32
    %c0_i32_1 = arith.constant 0 : i32
    return %c0_i32, %c0_i32_0 : i32, i32
  }
  func.func @transform_2(%arg0: i32) -> (i32, i32) {
    %c0_i32 = arith.constant 0 : i32
    %c0_i32_0 = arith.constant 0 : i32
    %c0_i32_1 = arith.constant 0 : i32
    return %c0_i32, %c0_i32_0 : i32, i32
  }
  func.func @transform_3(%arg0: i32) -> (i32, i32) {
    %c0_i32 = arith.constant 0 : i32
    %c0_i32_0 = arith.constant 0 : i32
    %c0_i32_1 = arith.constant 0 : i32
    return %c0_i32, %c0_i32_0 : i32, i32
  }
  func.func @transform_4(%arg0: i32) -> (i32, i32) {
    %c0_i32 = arith.constant 0 : i32
    %c0_i32_0 = arith.constant 0 : i32
    %c0_i32_1 = arith.constant 0 : i32
    return %c0_i32, %c0_i32_0 : i32, i32
  }
  func.func @transform_5(%arg0: i32) -> (i32, i32) {
    %c0_i32 = arith.constant 0 : i32
    %c0_i32_0 = arith.constant 0 : i32
    %c0_i32_1 = arith.constant 0 : i32
    return %c0_i32, %c0_i32_0 : i32, i32
  }
  func.func @transform_6(%arg0: i32) -> (i32, i32) {
    %c0_i32 = arith.constant 0 : i32
    %c0_i32_0 = arith.constant 0 : i32
    %c0_i32_1 = arith.constant 0 : i32
    return %c0_i32, %c0_i32_0 : i32, i32
  }
  func.func @transform_7(%arg0: i32) -> (i32, i32) {
    %c0_i32 = arith.constant 0 : i32
    %c0_i32_0 = arith.constant 0 : i32
    return %arg0, %c0_i32 : i32, i32
  }
}

</mosaic_0001>

<llo_original>
// kernel: tpu_custom_call.1
$region0: #{tpu_custom_call.1}
  #allocation0 [shape = 'u32[]', space=smem, size = 0x4, offset = 0x4, fixed_abs, tag = 'smem constant byte address 0x4 - core index']
  #allocation1 [shape = 'u32[144,128]{1,0:T(1,128)}', space=vmem, size = 0x12000, scoped, tag = 'internal scratch']
  %s0 = inlined_call_operand.vmem [shape: bf16[8,282], index: 0, kind: input, shape index: {}]
  %s1 = inlined_call_operand.hbm [shape: bf16[282,300], index: 1, kind: input, shape index: {}]
  %s2 = inlined_call_operand.vmem [shape: f32[1,300], index: 2, kind: input, shape index: {}]
  %s3 = inlined_call_operand.vmem [shape: bf16[300,50], index: 3, kind: input, shape index: {}]
  %s4 = inlined_call_operand.vmem [shape: f32[1,50], index: 4, kind: input, shape index: {}]
  %s5 = inlined_call_operand.vmem [shape: bf16[50,4], index: 5, kind: input, shape index: {}]
  %s6 = inlined_call_operand.vmem [shape: f32[1,4], index: 6, kind: input, shape index: {}]
  %s7 = inlined_call_operand.vmem [shape: f32[8,4], index: 7, kind: output, shape index: {}]
  %s8 = sld [smem:[#allocation0]]
  $region42: #{tpu_custom_call.1} parent=0
    _
  %s10 = ssub.s32 1, %s8
  %s11 = scalar_select 0, %s10, %s8
  $region1: #{tpu_custom_call.1} parent=0
    #allocation2 [shape = 'u8[221184]{0}', space=vmem, size = 0x36000, scoped, tag = 'input window, operand 1, single buffered']
    #allocation3 [shape = 's32[1]{0}', space=sflag, size = 0x4, scoped, tag = 'scoped memory for tpu_custom_call.1']
    %12 = vsyncpa [#allocation3], 0
    // Predicated region
    $region2: #{tpu_custom_call.1} parent=1 // pred_check
      _
    $region3: #{tpu_custom_call.1} parent=1 // pred_check_branch
      %14 = sbr.rel (0) target = $region5
    $region4: #{tpu_custom_call.1} parent=1 // pred_region
      _
    $region5: #{tpu_custom_call.1} parent=1 // pred_fallthru
      _
    // Predicated region
    $region6: #{tpu_custom_call.1} parent=1 // pred_check
      _
    $region7: #{tpu_custom_call.1} parent=1 // pred_check_branch
      %16 = sbr.rel (0) target = $region9
    $region8: #{tpu_custom_call.1} parent=1 // pred_region
      %s18 = ssub.s32 6912, 6912
      %19 = vsyncadd [#allocation3], %s18
      %s20 = sshll.u32 [#allocation2], 4
      %s21 = int_to_ptr.vmem [resolvable:$true] %s20
      %26 = dma.hbm_to_vmem [thread:$0]  %s1, 6912, %s21, [#allocation3], 192, 192, 12
    $region9: #{tpu_custom_call.1} parent=1 // pred_fallthru
      _
    // Predicated region
    $region10: #{tpu_custom_call.1} parent=1 // pred_check
      _
    $region11: #{tpu_custom_call.1} parent=1 // pred_check_branch
      %28 = sbr.rel (0) target = $region13
    $region12: #{tpu_custom_call.1} parent=1 // pred_region
      _
    $region13: #{tpu_custom_call.1} parent=1 // pred_fallthru
      _
    // Predicated region
    $region14: #{tpu_custom_call.1} parent=1 // pred_check
      _
    $region15: #{tpu_custom_call.1} parent=1 // pred_check_branch
      %30 = sbr.rel (0) target = $region17
    $region16: #{tpu_custom_call.1} parent=1 // pred_region
      _
    $region17: #{tpu_custom_call.1} parent=1 // pred_fallthru
      _
    // Predicated region
    $region18: #{tpu_custom_call.1} parent=1 // pred_check
      _
    $region19: #{tpu_custom_call.1} parent=1 // pred_check_branch
      %32 = sbr.rel (0) target = $region21
    $region20: #{tpu_custom_call.1} parent=1 // pred_region
      _
    $region21: #{tpu_custom_call.1} parent=1 // pred_fallthru
      _
    // Predicated region
    $region22: #{tpu_custom_call.1} parent=1 // pred_check
      _
    $region23: #{tpu_custom_call.1} parent=1 // pred_check_branch
      %34 = sbr.rel (0) target = $region25
    $region24: #{tpu_custom_call.1} parent=1 // pred_region
      _
    $region25: #{tpu_custom_call.1} parent=1 // pred_fallthru
      _
    // Predicated region
    $region26: #{tpu_custom_call.1} parent=1 // pred_check
      _
    $region27: #{tpu_custom_call.1} parent=1 // pred_check_branch
      %36 = sbr.rel (0) target = $region29
    $region28: #{tpu_custom_call.1} parent=1 // pred_region
      _
    $region29: #{tpu_custom_call.1} parent=1 // pred_fallthru
      _
    // Predicated region
    $region30: #{tpu_custom_call.1} parent=1 // pred_check
      _
    $region31: #{tpu_custom_call.1} parent=1 // pred_check_branch
      %38 = sbr.rel (0) target = $region33
    $region32: #{tpu_custom_call.1} parent=1 // pred_region
      %39 = dma.done [#allocation3], 6912
    $region33: #{tpu_custom_call.1} parent=1 // pred_fallthru
      _
    %v41 = vld [vmem:[%s0] sm:$0xff]
    %v42 = vld [vmem:[%s0 + $0x8] sm:$0xf]
    %v43 = vld [vmem:[#allocation2] sm:$0xff]
    %v44 = vld [vmem:[#allocation2 + $0x8] sm:$0xf]
    %v45 = vld [vmem:[#allocation2 + $0xc] sm:$0xff]
    %v46 = vld [vmem:[#allocation2 + $0x14] sm:$0xf]
    %v47 = vld [vmem:[#allocation2 + $0x18] sm:$0xff]
    %v48 = vld [vmem:[#allocation2 + $0x20] sm:$0xf]
    %v49 = vld [vmem:[#allocation2 + $0x24] sm:$0xff]
    %v50 = vld [vmem:[#allocation2 + $0x2c] sm:$0xf]
    %v51 = vld [vmem:[#allocation2 + $0x30] sm:$0xff]
    %v52 = vld [vmem:[#allocation2 + $0x38] sm:$0xf]
    %v53 = vld [vmem:[#allocation2 + $0x3c] sm:$0xff]
    %v54 = vld [vmem:[#allocation2 + $0x44] sm:$0xf]
    %v55 = vld [vmem:[#allocation2 + $0x48] sm:$0xff]
    %v56 = vld [vmem:[#allocation2 + $0x50] sm:$0xf]
    %v57 = vld [vmem:[#allocation2 + $0x54] sm:$0xff]
    %v58 = vld [vmem:[#allocation2 + $0x5c] sm:$0xf]
    %v59 = vld [vmem:[#allocation2 + $0x60] sm:$0xff]
    %v60 = vld [vmem:[#allocation2 + $0x68] sm:$0xf]
    %v61 = vld [vmem:[#allocation2 + $0x6c] sm:$0xff]
    %v62 = vld [vmem:[#allocation2 + $0x74] sm:$0xf]
    %v63 = vld [vmem:[#allocation2 + $0x78] sm:$0xff]
    %v64 = vld [vmem:[#allocation2 + $0x80] sm:$0xf]
    %v65 = vld [vmem:[#allocation2 + $0x84] sm:$0xff]
    %v66 = vld [vmem:[#allocation2 + $0x8c] sm:$0xf]
    %v67 = vld [vmem:[#allocation2 + $0x90] sm:$0xff]
    %v68 = vld [vmem:[#allocation2 + $0x98] sm:$0xf]
    %v69 = vld [vmem:[#allocation2 + $0x9c] sm:$0xff]
    %v70 = vld [vmem:[#allocation2 + $0xa4] sm:$0xf]
    %v71 = vld [vmem:[#allocation2 + $0xa8] sm:$0xff]
    %v72 = vld [vmem:[#allocation2 + $0xb0] sm:$0xf]
    %v73 = vld [vmem:[#allocation2 + $0xb4] sm:$0xff]
    %v74 = vld [vmem:[#allocation2 + $0xbc] sm:$0xf]
    %v75 = vld [vmem:[#allocation2 + $0xc0] sm:$0xff]
    %v76 = vld [vmem:[#allocation2 + $0xc8] sm:$0xf]
    %v77 = vld [vmem:[#allocation2 + $0xcc] sm:$0xff]
    %v78 = vld [vmem:[#allocation2 + $0xd4] sm:$0xf]
    %v79 = vld [vmem:[#allocation2 + $0xd8] sm:$0xff]
    %v80 = vld [vmem:[#allocation2 + $0xe0] sm:$0xf]
    %v81 = vld [vmem:[#allocation2 + $0xe4] sm:$0xff]
    %v82 = vld [vmem:[#allocation2 + $0xec] sm:$0xf]
    %v83 = vld [vmem:[#allocation2 + $0xf0] sm:$0xff]
    %v84 = vld [vmem:[#allocation2 + $0xf8] sm:$0xf]
    %v85 = vld [vmem:[#allocation2 + $0xfc] sm:$0xff]
    %v86 = vld [vmem:[#allocation2 + $0x104] sm:$0xf]
    %v87 = vld [vmem:[#allocation2 + $0x108] sm:$0xff]
    %v88 = vld [vmem:[#allocation2 + $0x110] sm:$0xf]
    %v89 = vld [vmem:[#allocation2 + $0x114] sm:$0xff]
    %v90 = vld [vmem:[#allocation2 + $0x11c] sm:$0xf]
    %v91 = vld [vmem:[#allocation2 + $0x120] sm:$0xff]
    %v92 = vld [vmem:[#allocation2 + $0x128] sm:$0xf]
    %v93 = vld [vmem:[#allocation2 + $0x12c] sm:$0xff]
    %v94 = vld [vmem:[#allocation2 + $0x134] sm:$0xf]
    %v95 = vld [vmem:[#allocation2 + $0x138] sm:$0xff]
    %v96 = vld [vmem:[#allocation2 + $0x140] sm:$0xf]
    %v97 = vld [vmem:[#allocation2 + $0x144] sm:$0xff]
    %v98 = vld [vmem:[#allocation2 + $0x14c] sm:$0xf]
    %v99 = vld [vmem:[#allocation2 + $0x150] sm:$0xff]
    %v100 = vld [vmem:[#allocation2 + $0x158] sm:$0xf]
    %v101 = vld [vmem:[#allocation2 + $0x15c] sm:$0xff]
    %v102 = vld [vmem:[#allocation2 + $0x164] sm:$0xf]
    %v103 = vld [vmem:[#allocation2 + $0x168] sm:$0xff]
    %v104 = vld [vmem:[#allocation2 + $0x170] sm:$0xf]
    %v105 = vld [vmem:[#allocation2 + $0x174] sm:$0xff]
    %v106 = vld [vmem:[#allocation2 + $0x17c] sm:$0xf]
    %v107 = vld [vmem:[#allocation2 + $0x180] sm:$0xff]
    %v108 = vld [vmem:[#allocation2 + $0x188] sm:$0xf]
    %v109 = vld [vmem:[#allocation2 + $0x18c] sm:$0xff]
    %v110 = vld [vmem:[#allocation2 + $0x194] sm:$0xf]
    %v111 = vld [vmem:[#allocation2 + $0x198] sm:$0xff]
    %v112 = vld [vmem:[#allocation2 + $0x1a0] sm:$0xf]
    %v113 = vld [vmem:[#allocation2 + $0x1a4] sm:$0x11]
    %v114 = vld [vmem:[#allocation2 + $0x1ac] sm:$0x1]
    %v115 = vld [vmem:[%s2] sm:$0x7]
    %v117 = vlaneseq
    %v118 = vshrl.u32 %v117, 7
    %v119 = vsub.s32 0, %v118
    %v120 = vrot.slane %v115, %v119
    %v121 = vlaneseq
    %v122 = vshrl.u32 %v121, 7
    %v123 = vsub.s32 1, %v122
    %v124 = vrot.slane %v115, %v123
    %v125 = vlaneseq
    %v126 = vshrl.u32 %v125, 7
    %v127 = vsub.s32 2, %v126
    %v128 = vrot.slane %v115, %v127
    %v134 = vunpack.c.l.b16 %v41
    %v135 = vunpack.c.h.b16 %v41
    %v136 = vunpack.c.l.b16 %v42
    %v137 = vpack.c.b16 %v134, %v134
    %v138 = vpack.c.b16 %v135, %v135
    %v139 = vpack.c.b16 %v136, %v136
    %v214 = vunpack.c.l.b16 %v43
    %v215 = vunpack.c.h.b16 %v43
    %v216 = vunpack.c.l.b16 %v44
    %v217 = vunpack.c.l.b16 %v45
    %v218 = vunpack.c.h.b16 %v45
    %v219 = vunpack.c.l.b16 %v46
    %v220 = vunpack.c.l.b16 %v47
    %v221 = vunpack.c.h.b16 %v47
    %v222 = vunpack.c.l.b16 %v48
    %v223 = vunpack.c.l.b16 %v49
    %v224 = vunpack.c.h.b16 %v49
    %v225 = vunpack.c.l.b16 %v50
    %v226 = vunpack.c.l.b16 %v51
    %v227 = vunpack.c.h.b16 %v51
    %v228 = vunpack.c.l.b16 %v52
    %v229 = vunpack.c.l.b16 %v53
    %v230 = vunpack.c.h.b16 %v53
    %v231 = vunpack.c.l.b16 %v54
    %v232 = vunpack.c.l.b16 %v55
    %v233 = vunpack.c.h.b16 %v55
    %v234 = vunpack.c.l.b16 %v56
    %v235 = vunpack.c.l.b16 %v57
    %v236 = vunpack.c.h.b16 %v57
    %v237 = vunpack.c.l.b16 %v58
    %v238 = vunpack.c.l.b16 %v59
    %v239 = vunpack.c.h.b16 %v59
    %v240 = vunpack.c.l.b16 %v60
    %v241 = vunpack.c.l.b16 %v61
    %v242 = vunpack.c.h.b16 %v61
    %v243 = vunpack.c.l.b16 %v62
    %v244 = vunpack.c.l.b16 %v63
    %v245 = vunpack.c.h.b16 %v63
    %v246 = vunpack.c.l.b16 %v64
    %v247 = vunpack.c.l.b16 %v65
    %v248 = vunpack.c.h.b16 %v65
    %v249 = vunpack.c.l.b16 %v66
    %v250 = vunpack.c.l.b16 %v67
    %v251 = vunpack.c.h.b16 %v67
    %v252 = vunpack.c.l.b16 %v68
    %v253 = vunpack.c.l.b16 %v69
    %v254 = vunpack.c.h.b16 %v69
    %v255 = vunpack.c.l.b16 %v70
    %v256 = vunpack.c.l.b16 %v71
    %v257 = vunpack.c.h.b16 %v71
    %v258 = vunpack.c.l.b16 %v72
    %v259 = vunpack.c.l.b16 %v73
    %v260 = vunpack.c.h.b16 %v73
    %v261 = vunpack.c.l.b16 %v74
    %v262 = vunpack.c.l.b16 %v75
    %v263 = vunpack.c.h.b16 %v75
    %v264 = vunpack.c.l.b16 %v76
    %v265 = vunpack.c.l.b16 %v77
    %v266 = vunpack.c.h.b16 %v77
    %v267 = vunpack.c.l.b16 %v78
    %v268 = vunpack.c.l.b16 %v79
    %v269 = vunpack.c.h.b16 %v79
    %v270 = vunpack.c.l.b16 %v80
    %v271 = vunpack.c.l.b16 %v81
    %v272 = vunpack.c.h.b16 %v81
    %v273 = vunpack.c.l.b16 %v82
    %v274 = vunpack.c.l.b16 %v83
    %v275 = vunpack.c.h.b16 %v83
    %v276 = vunpack.c.l.b16 %v84
    %v277 = vunpack.c.l.b16 %v85
    %v278 = vunpack.c.h.b16 %v85
    %v279 = vunpack.c.l.b16 %v86
    %v280 = vunpack.c.l.b16 %v87
    %v281 = vunpack.c.h.b16 %v87
    %v282 = vunpack.c.l.b16 %v88
    %v283 = vunpack.c.l.b16 %v89
    %v284 = vunpack.c.h.b16 %v89
    %v285 = vunpack.c.l.b16 %v90
    %v286 = vunpack.c.l.b16 %v91
    %v287 = vunpack.c.h.b16 %v91
    %v288 = vunpack.c.l.b16 %v92
    %v289 = vunpack.c.l.b16 %v93
    %v290 = vunpack.c.h.b16 %v93
    %v291 = vunpack.c.l.b16 %v94
    %v292 = vunpack.c.l.b16 %v95
    %v293 = vunpack.c.h.b16 %v95
    %v294 = vunpack.c.l.b16 %v96
    %v295 = vunpack.c.l.b16 %v97
    %v296 = vunpack.c.h.b16 %v97
    %v297 = vunpack.c.l.b16 %v98
    %v298 = vunpack.c.l.b16 %v99
    %v299 = vunpack.c.h.b16 %v99
    %v300 = vunpack.c.l.b16 %v100
    %v301 = vunpack.c.l.b16 %v101
    %v302 = vunpack.c.h.b16 %v101
    %v303 = vunpack.c.l.b16 %v102
    %v304 = vunpack.c.l.b16 %v103
    %v305 = vunpack.c.h.b16 %v103
    %v306 = vunpack.c.l.b16 %v104
    %v307 = vunpack.c.l.b16 %v105
    %v308 = vunpack.c.h.b16 %v105
    %v309 = vunpack.c.l.b16 %v106
    %v310 = vunpack.c.l.b16 %v107
    %v311 = vunpack.c.h.b16 %v107
    %v312 = vunpack.c.l.b16 %v108
    %v313 = vunpack.c.l.b16 %v109
    %v314 = vunpack.c.h.b16 %v109
    %v315 = vunpack.c.l.b16 %v110
    %v316 = vunpack.c.l.b16 %v111
    %v317 = vunpack.c.h.b16 %v111
    %v318 = vunpack.c.l.b16 %v112
    %v319 = vunpack.c.l.b16 %v113
    %v320 = vunpack.c.h.b16 %v113
    %v321 = vunpack.c.l.b16 %v114
    %v322 = vpack.c.b16 %v217, %v214
    %v323 = vpack.c.b16 %v218, %v215
    %v324 = vpack.c.b16 %v219, %v216
    %v325 = vpack.c.b16 %v223, %v220
    %v326 = vpack.c.b16 %v224, %v221
    %v327 = vpack.c.b16 %v225, %v222
    %v328 = vpack.c.b16 %v229, %v226
    %v329 = vpack.c.b16 %v230, %v227
    %v330 = vpack.c.b16 %v231, %v228
    %v331 = vpack.c.b16 %v235, %v232
    %v332 = vpack.c.b16 %v236, %v233
    %v333 = vpack.c.b16 %v237, %v234
    %v334 = vpack.c.b16 %v241, %v238
    %v335 = vpack.c.b16 %v242, %v239
    %v336 = vpack.c.b16 %v243, %v240
    %v337 = vpack.c.b16 %v247, %v244
    %v338 = vpack.c.b16 %v248, %v245
    %v339 = vpack.c.b16 %v249, %v246
    %v340 = vpack.c.b16 %v253, %v250
    %v341 = vpack.c.b16 %v254, %v251
    %v342 = vpack.c.b16 %v255, %v252
    %v343 = vpack.c.b16 %v259, %v256
    %v344 = vpack.c.b16 %v260, %v257
    %v345 = vpack.c.b16 %v261, %v258
    %v346 = vpack.c.b16 %v265, %v262
    %v347 = vpack.c.b16 %v266, %v263
    %v348 = vpack.c.b16 %v267, %v264
    %v349 = vpack.c.b16 %v271, %v268
    %v350 = vpack.c.b16 %v272, %v269
    %v351 = vpack.c.b16 %v273, %v270
    %v352 = vpack.c.b16 %v277, %v274
    %v353 = vpack.c.b16 %v278, %v275
    %v354 = vpack.c.b16 %v279, %v276
    %v355 = vpack.c.b16 %v283, %v280
    %v356 = vpack.c.b16 %v284, %v281
    %v357 = vpack.c.b16 %v285, %v282
    %v358 = vpack.c.b16 %v289, %v286
    %v359 = vpack.c.b16 %v290, %v287
    %v360 = vpack.c.b16 %v291, %v288
    %v361 = vpack.c.b16 %v295, %v292
    %v362 = vpack.c.b16 %v296, %v293
    %v363 = vpack.c.b16 %v297, %v294
    %v364 = vpack.c.b16 %v301, %v298
    %v365 = vpack.c.b16 %v302, %v299
    %v366 = vpack.c.b16 %v303, %v300
    %v367 = vpack.c.b16 %v307, %v304
    %v368 = vpack.c.b16 %v308, %v305
    %v369 = vpack.c.b16 %v309, %v306
    %v370 = vpack.c.b16 %v313, %v310
    %v371 = vpack.c.b16 %v314, %v311
    %v372 = vpack.c.b16 %v315, %v312
    %v373 = vpack.c.b16 %v319, %v316
    %v374 = vpack.c.b16 %v320, %v317
    %v375 = vpack.c.b16 %v321, %v318
    %vm427 = vcmask 211968
    %v429 = vsel %vm427, %v139, 0
    %vm431 = vcmask 1044480
    %v433 = vsel %vm431, %v373, 0
    %v436 = vsel %vm431, %v374, 0
    %v439 = vsel %vm431, %v375, 0
    %441 = vmatprep.subr.bf16.mxu0 %v323
    %442 = vmatpush1.bf16.msra.mxu0 %v322
    %443 = vmatprep.subr.bf16.mxu0 %v326
    %444 = vmatpush1.bf16.msra.mxu0 %v325
    %445 = vmatprep.subr.bf16.mxu0 %v329
    %446 = vmatpush1.bf16.msra.mxu0 %v328
    %447 = vmatprep.subr.bf16.mxu0 %v332
    %448 = vmatpush1.bf16.msra.mxu0 %v331
    %449 = vmatprep.subr.bf16.mxu0 %v335
    %450 = vmatpush1.bf16.msra.mxu0 %v334
    %451 = vmatprep.subr.bf16.mxu0 %v338
    %452 = vmatpush1.bf16.msra.mxu0 %v337
    %453 = vmatprep.subr.bf16.mxu0 %v341
    %454 = vmatpush1.bf16.msra.mxu0 %v340
    %455 = vmatprep.subr.bf16.mxu0 %v344
    %456 = vmatpush1.bf16.msra.mxu0 %v343
    %457 = vmatprep.subr.bf16.mxu0 %v347
    %458 = vmatpush1.bf16.msra.mxu0 %v346
    %459 = vmatprep.subr.bf16.mxu0 %v350
    %460 = vmatpush1.bf16.msra.mxu0 %v349
    %461 = vmatprep.subr.bf16.mxu0 %v353
    %462 = vmatpush1.bf16.msra.mxu0 %v352
    %463 = vmatprep.subr.bf16.mxu0 %v356
    %464 = vmatpush1.bf16.msra.mxu0 %v355
    %465 = vmatprep.subr.bf16.mxu0 %v359
    %466 = vmatpush1.bf16.msra.mxu0 %v358
    %467 = vmatprep.subr.bf16.mxu0 %v362
    %468 = vmatpush1.bf16.msra.mxu0 %v361
    %469 = vmatprep.subr.bf16.mxu0 %v365
    %470 = vmatpush1.bf16.msra.mxu0 %v364
    %471 = vmatprep.subr.bf16.mxu0 %v368
    %472 = vmatpush1.bf16.msra.mxu0 %v367
    %473 = vmatprep.mubr.bf16.mxu0 %v138
    %474 = vmatmul.mubr.bf16.gmra.mrb[0].mxu0 %v137
    %v475 = vpop.f32.mrb[0].mxu0
    %v476 = vadd.f32 %v120, %v475
    %v477 = vpop.f32.mrb[0].mxu0
    %v478 = vadd.f32 %v124, %v477
    %v479 = vpop.f32.mrb[0].mxu0
    %v480 = vpop.f32.mrb[0].mxu0
    %481 = vdwg.mxu0
    %482 = vmatprep.subr.bf16.mxu0 %v371
    %483 = vmatpush1.bf16.msra.mxu0 %v370
    %484 = vmatprep.subr.bf16.mxu0 %v436
    %485 = vmatpush1.bf16.msra.mxu0 %v433
    %486 = vmatprep.subr.bf16.mxu0 0
    %487 = vmatpush1.bf16.msra.mxu0 0
    %488 = vmatprep.subr.bf16.mxu0 0
    %489 = vmatpush1.bf16.msra.mxu0 0
    %490 = vmatprep.subr.bf16.mxu0 0
    %491 = vmatpush1.bf16.msra.mxu0 0
    %492 = vmatprep.subr.bf16.mxu0 0
    %493 = vmatpush1.bf16.msra.mxu0 0
    %494 = vmatprep.subr.bf16.mxu0 0
    %495 = vmatpush1.bf16.msra.mxu0 0
    %496 = vmatprep.subr.bf16.mxu0 0
    %497 = vmatpush1.bf16.msra.mxu0 0
    %498 = vmatprep.subr.bf16.mxu0 0
    %499 = vmatpush1.bf16.msra.mxu0 0
    %500 = vmatprep.subr.bf16.mxu0 0
    %501 = vmatpush1.bf16.msra.mxu0 0
    %502 = vmatprep.subr.bf16.mxu0 0
    %503 = vmatpush1.bf16.msra.mxu0 0
    %504 = vmatprep.subr.bf16.mxu0 0
    %505 = vmatpush1.bf16.msra.mxu0 0
    %506 = vmatprep.subr.bf16.mxu0 0
    %507 = vmatpush1.bf16.msra.mxu0 0
    %508 = vmatprep.subr.bf16.mxu0 0
    %509 = vmatpush1.bf16.msra.mxu0 0
    %510 = vmatprep.subr.bf16.mxu0 0
    %511 = vmatpush1.bf16.msra.mxu0 0
    %512 = vmatprep.subr.bf16.mxu0 0
    %513 = vmatpush1.bf16.msra.mxu0 0
    %514 = vmatprep.mubr.bf16.mxu0 0
    %515 = vmatmul.mubr.bf16.gmra.mrb[0].mxu0 %v429
    %v516 = vpop.f32.mrb[0].mxu0
    %v517 = vadd.f32 %v476, %v516
    %v518 = vpop.f32.mrb[0].mxu0
    %v519 = vadd.f32 %v478, %v518
    %v520 = vpop.f32.mrb[0].mxu0
    %v521 = vpop.f32.mrb[0].mxu0
    %522 = vdwg.mxu0
    %523 = vmatprep.subr.bf16.mxu0 0
    %524 = vmatpush1.bf16.msra.mxu0 %v324
    %525 = vmatprep.subr.bf16.mxu0 0
    %526 = vmatpush1.bf16.msra.mxu0 %v327
    %527 = vmatprep.subr.bf16.mxu0 0
    %528 = vmatpush1.bf16.msra.mxu0 %v330
    %529 = vmatprep.subr.bf16.mxu0 0
    %530 = vmatpush1.bf16.msra.mxu0 %v333
    %531 = vmatprep.subr.bf16.mxu0 0
    %532 = vmatpush1.bf16.msra.mxu0 %v336
    %533 = vmatprep.subr.bf16.mxu0 0
    %534 = vmatpush1.bf16.msra.mxu0 %v339
    %535 = vmatprep.subr.bf16.mxu0 0
    %536 = vmatpush1.bf16.msra.mxu0 %v342
    %537 = vmatprep.subr.bf16.mxu0 0
    %538 = vmatpush1.bf16.msra.mxu0 %v345
    %539 = vmatprep.subr.bf16.mxu0 0
    %540 = vmatpush1.bf16.msra.mxu0 %v348
    %541 = vmatprep.subr.bf16.mxu0 0
    %542 = vmatpush1.bf16.msra.mxu0 %v351
    %543 = vmatprep.subr.bf16.mxu0 0
    %544 = vmatpush1.bf16.msra.mxu0 %v354
    %545 = vmatprep.subr.bf16.mxu0 0
    %546 = vmatpush1.bf16.msra.mxu0 %v357
    %547 = vmatprep.subr.bf16.mxu0 0
    %548 = vmatpush1.bf16.msra.mxu0 %v360
    %549 = vmatprep.subr.bf16.mxu0 0
    %550 = vmatpush1.bf16.msra.mxu0 %v363
    %551 = vmatprep.subr.bf16.mxu0 0
    %552 = vmatpush1.bf16.msra.mxu0 %v366
    %553 = vmatprep.subr.bf16.mxu0 0
    %554 = vmatpush1.bf16.msra.mxu0 %v369
    %555 = vmatprep.mubr.bf16.mxu0 %v138
    %556 = vmatmul.mubr.bf16.gmra.mrb[0].mxu0 %v137
    %v557 = vpop.f32.mrb[0].mxu0
    %v558 = vadd.f32 %v128, %v557
    %v559 = vpop.f32.mrb[0].mxu0
    %v560 = vpop.f32.mrb[0].mxu0
    %v561 = vpop.f32.mrb[0].mxu0
    %562 = vdwg.mxu0
    %563 = vmatprep.subr.bf16.mxu0 0
    %564 = vmatpush1.bf16.msra.mxu0 %v372
    %565 = vmatprep.subr.bf16.mxu0 0
    %566 = vmatpush1.bf16.msra.mxu0 %v439
    %567 = vmatprep.subr.bf16.mxu0 0
    %568 = vmatpush1.bf16.msra.mxu0 0
    %569 = vmatprep.subr.bf16.mxu0 0
    %570 = vmatpush1.bf16.msra.mxu0 0
    %571 = vmatprep.subr.bf16.mxu0 0
    %572 = vmatpush1.bf16.msra.mxu0 0
    %573 = vmatprep.subr.bf16.mxu0 0
    %574 = vmatpush1.bf16.msra.mxu0 0
    %575 = vmatprep.subr.bf16.mxu0 0
    %576 = vmatpush1.bf16.msra.mxu0 0
    %577 = vmatprep.subr.bf16.mxu0 0
    %578 = vmatpush1.bf16.msra.mxu0 0
    %579 = vmatprep.subr.bf16.mxu0 0
    %580 = vmatpush1.bf16.msra.mxu0 0
    %581 = vmatprep.subr.bf16.mxu0 0
    %582 = vmatpush1.bf16.msra.mxu0 0
    %583 = vmatprep.subr.bf16.mxu0 0
    %584 = vmatpush1.bf16.msra.mxu0 0
    %585 = vmatprep.subr.bf16.mxu0 0
    %586 = vmatpush1.bf16.msra.mxu0 0
    %587 = vmatprep.subr.bf16.mxu0 0
    %588 = vmatpush1.bf16.msra.mxu0 0
    %589 = vmatprep.subr.bf16.mxu0 0
    %590 = vmatpush1.bf16.msra.mxu0 0
    %591 = vmatprep.subr.bf16.mxu0 0
    %592 = vmatpush1.bf16.msra.mxu0 0
    %593 = vmatprep.subr.bf16.mxu0 0
    %594 = vmatpush1.bf16.msra.mxu0 0
    %595 = vmatprep.mubr.bf16.mxu0 0
    %596 = vmatmul.mubr.bf16.gmra.mrb[0].mxu0 %v429
    %v597 = vpop.f32.mrb[0].mxu0
    %v598 = vadd.f32 %v558, %v597
    %v599 = vpop.f32.mrb[0].mxu0
    %v600 = vpop.f32.mrb[0].mxu0
    %v601 = vpop.f32.mrb[0].mxu0
    %602 = vdwg.mxu0
    %v603 = vmax.f32 %v517, 0.0
    %v604 = vmax.f32 %v519, 0.0
    %v605 = vmax.f32 %v598, 0.0
    %v606 = vpack.c.bf16 %v603, %v603
    %v607 = vpack.c.bf16 %v604, %v604
    %v608 = vpack.c.bf16 %v605, %v605
    %v609 = vld [vmem:[%s3] sm:$0xf]
    %v610 = vld [vmem:[%s3 + $0x4] sm:$0xf]
    %v611 = vld [vmem:[%s3 + $0x8] sm:$0xf]
    %v612 = vld [vmem:[%s3 + $0xc] sm:$0xf]
    %v613 = vld [vmem:[%s3 + $0x10] sm:$0xf]
    %v614 = vld [vmem:[%s3 + $0x14] sm:$0xf]
    %v615 = vld [vmem:[%s3 + $0x18] sm:$0xf]
    %v616 = vld [vmem:[%s3 + $0x1c] sm:$0xf]
    %v617 = vld [vmem:[%s3 + $0x20] sm:$0xf]
    %v618 = vld [vmem:[%s3 + $0x24] sm:$0xf]
    %v619 = vld [vmem:[%s3 + $0x28] sm:$0xf]
    %v620 = vld [vmem:[%s3 + $0x2c] sm:$0xf]
    %v621 = vld [vmem:[%s3 + $0x30] sm:$0xf]
    %v622 = vld [vmem:[%s3 + $0x34] sm:$0xf]
    %v623 = vld [vmem:[%s3 + $0x38] sm:$0xf]
    %v624 = vld [vmem:[%s3 + $0x3c] sm:$0xf]
    %v625 = vld [vmem:[%s3 + $0x40] sm:$0xf]
    %v626 = vld [vmem:[%s3 + $0x44] sm:$0xf]
    %v627 = vld [vmem:[%s3 + $0x48] sm:$0xf]
    %v628 = vld [vmem:[%s3 + $0x4c] sm:$0xf]
    %v629 = vld [vmem:[%s3 + $0x50] sm:$0xf]
    %v630 = vld [vmem:[%s3 + $0x54] sm:$0xf]
    %v631 = vld [vmem:[%s3 + $0x58] sm:$0xf]
    %v632 = vld [vmem:[%s3 + $0x5c] sm:$0xf]
    %v633 = vld [vmem:[%s3 + $0x60] sm:$0xf]
    %v634 = vld [vmem:[%s3 + $0x64] sm:$0xf]
    %v635 = vld [vmem:[%s3 + $0x68] sm:$0xf]
    %v636 = vld [vmem:[%s3 + $0x6c] sm:$0xf]
    %v637 = vld [vmem:[%s3 + $0x70] sm:$0xf]
    %v638 = vld [vmem:[%s3 + $0x74] sm:$0xf]
    %v639 = vld [vmem:[%s3 + $0x78] sm:$0xf]
    %v640 = vld [vmem:[%s3 + $0x7c] sm:$0xf]
    %v641 = vld [vmem:[%s3 + $0x80] sm:$0xf]
    %v642 = vld [vmem:[%s3 + $0x84] sm:$0xf]
    %v643 = vld [vmem:[%s3 + $0x88] sm:$0xf]
    %v644 = vld [vmem:[%s3 + $0x8c] sm:$0xf]
    %v645 = vld [vmem:[%s3 + $0x90] sm:$0xf]
    %v646 = vld [vmem:[%s3 + $0x94] sm:$0x3]
    %v647 = vld [vmem:[%s4] sm:$0x1]
    %v649 = vlaneseq
    %v650 = vshrl.u32 %v649, 7
    %v651 = vsub.s32 0, %v650
    %v652 = vrot.slane %v647, %v651
    %v692 = vunpack.c.l.b16 %v609
    %v693 = vunpack.c.l.b16 %v610
    %v694 = vunpack.c.l.b16 %v611
    %v695 = vunpack.c.l.b16 %v612
    %v696 = vunpack.c.l.b16 %v613
    %v697 = vunpack.c.l.b16 %v614
    %v698 = vunpack.c.l.b16 %v615
    %v699 = vunpack.c.l.b16 %v616
    %v700 = vunpack.c.l.b16 %v617
    %v701 = vunpack.c.l.b16 %v618
    %v702 = vunpack.c.l.b16 %v619
    %v703 = vunpack.c.l.b16 %v620
    %v704 = vunpack.c.l.b16 %v621
    %v705 = vunpack.c.l.b16 %v622
    %v706 = vunpack.c.l.b16 %v623
    %v707 = vunpack.c.l.b16 %v624
    %v708 = vunpack.c.l.b16 %v625
    %v709 = vunpack.c.l.b16 %v626
    %v710 = vunpack.c.l.b16 %v627
    %v711 = vunpack.c.l.b16 %v628
    %v712 = vunpack.c.l.b16 %v629
    %v713 = vunpack.c.l.b16 %v630
    %v714 = vunpack.c.l.b16 %v631
    %v715 = vunpack.c.l.b16 %v632
    %v716 = vunpack.c.l.b16 %v633
    %v717 = vunpack.c.l.b16 %v634
    %v718 = vunpack.c.l.b16 %v635
    %v719 = vunpack.c.l.b16 %v636
    %v720 = vunpack.c.l.b16 %v637
    %v721 = vunpack.c.l.b16 %v638
    %v722 = vunpack.c.l.b16 %v639
    %v723 = vunpack.c.l.b16 %v640
    %v724 = vunpack.c.l.b16 %v641
    %v725 = vunpack.c.l.b16 %v642
    %v726 = vunpack.c.l.b16 %v643
    %v727 = vunpack.c.l.b16 %v644
    %v728 = vunpack.c.l.b16 %v645
    %v729 = vunpack.c.l.b16 %v646
    %v730 = vpack.c.b16 %v693, %v692
    %v731 = vpack.c.b16 %v695, %v694
    %v732 = vpack.c.b16 %v697, %v696
    %v733 = vpack.c.b16 %v699, %v698
    %v734 = vpack.c.b16 %v701, %v700
    %v735 = vpack.c.b16 %v703, %v702
    %v736 = vpack.c.b16 %v705, %v704
    %v737 = vpack.c.b16 %v707, %v706
    %v738 = vpack.c.b16 %v709, %v708
    %v739 = vpack.c.b16 %v711, %v710
    %v740 = vpack.c.b16 %v713, %v712
    %v741 = vpack.c.b16 %v715, %v714
    %v742 = vpack.c.b16 %v717, %v716
    %v743 = vpack.c.b16 %v719, %v718
    %v744 = vpack.c.b16 %v721, %v720
    %v745 = vpack.c.b16 %v723, %v722
    %v746 = vpack.c.b16 %v725, %v724
    %v747 = vpack.c.b16 %v727, %v726
    %v748 = vpack.c.b16 %v729, %v728
    %vm767 = vcmask 359424
    %v769 = vsel %vm767, %v608, 0
    %vm771 = vcmask 1045504
    %v773 = vsel %vm771, %v748, 0
    %775 = vmatprep.subr.bf16.mxu0 0
    %776 = vmatpush1.bf16.msra.mxu0 %v730
    %777 = vmatprep.subr.bf16.mxu0 0
    %778 = vmatpush1.bf16.msra.mxu0 %v731
    %779 = vmatprep.subr.bf16.mxu0 0
    %780 = vmatpush1.bf16.msra.mxu0 %v732
    %781 = vmatprep.subr.bf16.mxu0 0
    %782 = vmatpush1.bf16.msra.mxu0 %v733
    %783 = vmatprep.subr.bf16.mxu0 0
    %784 = vmatpush1.bf16.msra.mxu0 %v734
    %785 = vmatprep.subr.bf16.mxu0 0
    %786 = vmatpush1.bf16.msra.mxu0 %v735
    %787 = vmatprep.subr.bf16.mxu0 0
    %788 = vmatpush1.bf16.msra.mxu0 %v736
    %789 = vmatprep.subr.bf16.mxu0 0
    %790 = vmatpush1.bf16.msra.mxu0 %v737
    %791 = vmatprep.subr.bf16.mxu0 0
    %792 = vmatpush1.bf16.msra.mxu0 %v738
    %793 = vmatprep.subr.bf16.mxu0 0
    %794 = vmatpush1.bf16.msra.mxu0 %v739
    %795 = vmatprep.subr.bf16.mxu0 0
    %796 = vmatpush1.bf16.msra.mxu0 %v740
    %797 = vmatprep.subr.bf16.mxu0 0
    %798 = vmatpush1.bf16.msra.mxu0 %v741
    %799 = vmatprep.subr.bf16.mxu0 0
    %800 = vmatpush1.bf16.msra.mxu0 %v742
    %801 = vmatprep.subr.bf16.mxu0 0
    %802 = vmatpush1.bf16.msra.mxu0 %v743
    %803 = vmatprep.subr.bf16.mxu0 0
    %804 = vmatpush1.bf16.msra.mxu0 %v744
    %805 = vmatprep.subr.bf16.mxu0 0
    %806 = vmatpush1.bf16.msra.mxu0 %v745
    %807 = vmatprep.mubr.bf16.mxu0 %v607
    %808 = vmatmul.mubr.bf16.gmra.mrb[0].mxu0 %v606
    %v809 = vpop.f32.mrb[0].mxu0
    %v810 = vadd.f32 %v652, %v809
    %v811 = vpop.f32.mrb[0].mxu0
    %v812 = vpop.f32.mrb[0].mxu0
    %v813 = vpop.f32.mrb[0].mxu0
    %814 = vdwg.mxu0
    %815 = vmatprep.subr.bf16.mxu0 0
    %816 = vmatpush1.bf16.msra.mxu0 %v746
    %817 = vmatprep.subr.bf16.mxu0 0
    %818 = vmatpush1.bf16.msra.mxu0 %v747
    %819 = vmatprep.subr.bf16.mxu0 0
    %820 = vmatpush1.bf16.msra.mxu0 %v773
    %821 = vmatprep.subr.bf16.mxu0 0
    %822 = vmatpush1.bf16.msra.mxu0 0
    %823 = vmatprep.subr.bf16.mxu0 0
    %824 = vmatpush1.bf16.msra.mxu0 0
    %825 = vmatprep.subr.bf16.mxu0 0
    %826 = vmatpush1.bf16.msra.mxu0 0
    %827 = vmatprep.subr.bf16.mxu0 0
    %828 = vmatpush1.bf16.msra.mxu0 0
    %829 = vmatprep.subr.bf16.mxu0 0
    %830 = vmatpush1.bf16.msra.mxu0 0
    %831 = vmatprep.subr.bf16.mxu0 0
    %832 = vmatpush1.bf16.msra.mxu0 0
    %833 = vmatprep.subr.bf16.mxu0 0
    %834 = vmatpush1.bf16.msra.mxu0 0
    %835 = vmatprep.subr.bf16.mxu0 0
    %836 = vmatpush1.bf16.msra.mxu0 0
    %837 = vmatprep.subr.bf16.mxu0 0
    %838 = vmatpush1.bf16.msra.mxu0 0
    %839 = vmatprep.subr.bf16.mxu0 0
    %840 = vmatpush1.bf16.msra.mxu0 0
    %841 = vmatprep.subr.bf16.mxu0 0
    %842 = vmatpush1.bf16.msra.mxu0 0
    %843 = vmatprep.subr.bf16.mxu0 0
    %844 = vmatpush1.bf16.msra.mxu0 0
    %845 = vmatprep.subr.bf16.mxu0 0
    %846 = vmatpush1.bf16.msra.mxu0 0
    %847 = vmatprep.mubr.bf16.mxu0 0
    %848 = vmatmul.mubr.bf16.gmra.mrb[0].mxu0 %v769
    %v849 = vpop.f32.mrb[0].mxu0
    %v850 = vadd.f32 %v810, %v849
    %v851 = vpop.f32.mrb[0].mxu0
    %v852 = vpop.f32.mrb[0].mxu0
    %v853 = vpop.f32.mrb[0].mxu0
    %854 = vdwg.mxu0
    %v855 = vmax.f32 %v850, 0.0
    %v856 = vpack.c.bf16 %v855, %v855
    %v857 = vld [vmem:[%s5] sm:$0xf]
    %v858 = vld [vmem:[%s5 + $0x4] sm:$0xf]
    %v859 = vld [vmem:[%s5 + $0x8] sm:$0xf]
    %v860 = vld [vmem:[%s5 + $0xc] sm:$0xf]
    %v861 = vld [vmem:[%s5 + $0x10] sm:$0xf]
    %v862 = vld [vmem:[%s5 + $0x14] sm:$0xf]
    %v863 = vld [vmem:[%s5 + $0x18] sm:$0x1]
    %v864 = vld [vmem:[%s6] sm:$0x1]
    %v866 = vlaneseq
    %v867 = vshrl.u32 %v866, 7
    %v868 = vsub.s32 0, %v867
    %v869 = vrot.slane %v864, %v868
    %v878 = vunpack.c.l.b16 %v857
    %v879 = vunpack.c.l.b16 %v858
    %v880 = vunpack.c.l.b16 %v859
    %v881 = vunpack.c.l.b16 %v860
    %v882 = vunpack.c.l.b16 %v861
    %v883 = vunpack.c.l.b16 %v862
    %v884 = vunpack.c.l.b16 %v863
    %v885 = vpack.c.b16 %v879, %v878
    %v886 = vpack.c.b16 %v881, %v880
    %v887 = vpack.c.b16 %v883, %v882
    %v888 = vpack.c.b16 %v884, %v884
    %vm892 = vcmask 408576
    %v894 = vsel %vm892, %v856, 0
    %vm896 = vcmask 1040384
    %v898 = vsel %vm896, %v888, 0
    %900 = vmatprep.subr.bf16.mxu0 0
    %901 = vmatpush1.bf16.msra.mxu0 %v885
    %902 = vmatprep.subr.bf16.mxu0 0
    %903 = vmatpush1.bf16.msra.mxu0 %v886
    %904 = vmatprep.subr.bf16.mxu0 0
    %905 = vmatpush1.bf16.msra.mxu0 %v887
    %906 = vmatprep.subr.bf16.mxu0 0
    %907 = vmatpush1.bf16.msra.mxu0 %v898
    %908 = vmatprep.subr.bf16.mxu0 0
    %909 = vmatpush1.bf16.msra.mxu0 0
    %910 = vmatprep.subr.bf16.mxu0 0
    %911 = vmatpush1.bf16.msra.mxu0 0
    %912 = vmatprep.subr.bf16.mxu0 0
    %913 = vmatpush1.bf16.msra.mxu0 0
    %914 = vmatprep.subr.bf16.mxu0 0
    %915 = vmatpush1.bf16.msra.mxu0 0
    %916 = vmatprep.subr.bf16.mxu0 0
    %917 = vmatpush1.bf16.msra.mxu0 0
    %918 = vmatprep.subr.bf16.mxu0 0
    %919 = vmatpush1.bf16.msra.mxu0 0
    %920 = vmatprep.subr.bf16.mxu0 0
    %921 = vmatpush1.bf16.msra.mxu0 0
    %922 = vmatprep.subr.bf16.mxu0 0
    %923 = vmatpush1.bf16.msra.mxu0 0
    %924 = vmatprep.subr.bf16.mxu0 0
    %925 = vmatpush1.bf16.msra.mxu0 0
    %926 = vmatprep.subr.bf16.mxu0 0
    %927 = vmatpush1.bf16.msra.mxu0 0
    %928 = vmatprep.subr.bf16.mxu0 0
    %929 = vmatpush1.bf16.msra.mxu0 0
    %930 = vmatprep.subr.bf16.mxu0 0
    %931 = vmatpush1.bf16.msra.mxu0 0
    %932 = vmatprep.mubr.bf16.mxu0 0
    %933 = vmatmul.mubr.bf16.gmra.mrb[0].mxu0 %v894
    %v934 = vpop.f32.mrb[0].mxu0
    %v935 = vadd.f32 %v869, %v934
    %v936 = vpop.f32.mrb[0].mxu0
    %v937 = vpop.f32.mrb[0].mxu0
    %v938 = vpop.f32.mrb[0].mxu0
    %939 = vdwg.mxu0
    %vm940 = vcmask 31744
    %941 = vst.msk [vmem:[%s7] sm:$0xff] %vm940, %v935
    // Predicated region
    $region34: #{tpu_custom_call.1} parent=1 // pred_check
      _
    $region35: #{tpu_custom_call.1} parent=1 // pred_check_branch
      %943 = sbr.rel (0) target = $region37
    $region36: #{tpu_custom_call.1} parent=1 // pred_region
      _
    $region37: #{tpu_custom_call.1} parent=1 // pred_fallthru
      _
    // Predicated region
    $region38: #{tpu_custom_call.1} parent=1 // pred_check
      _
    $region39: #{tpu_custom_call.1} parent=1 // pred_check_branch
      %945 = sbr.rel (0) target = $region41
    $region40: #{tpu_custom_call.1} parent=1 // pred_region
      _
    $region41: #{tpu_custom_call.1} parent=1 // pred_fallthru
      _
    %946 = vsyncpa [#allocation3], 1

</llo_original>
